<compile_context>
chip_gen: v7x
topology: tpu7x:2x2x1
jax: 0.10.0
libtpu: 0.0.40
codegen_flags: <defaults>
</compile_context>

<pallas_src>
import functools

import jax
import jax.numpy as jnp
from jax.experimental import pallas as pl
from jax.experimental.pallas import tpu as pltpu


def _round_up(x, m):
    return (x + m - 1) // m * m


# ---------------------------------------------------------------------------
# Layer 1: im2col matmul kernel (bf16 MXU operands, f32 acc, bias + LeakyReLU)
# ---------------------------------------------------------------------------
def _conv1_mm_kernel(p_ref, w_ref, b_ref, o_ref, *, leaky_slope):
    acc = jnp.dot(p_ref[...], w_ref[...], preferred_element_type=jnp.float32)
    acc = acc + b_ref[...]                        # (1, Cout) broadcast over rows
    acc = jnp.where(acc >= 0, acc, leaky_slope * acc)
    o_ref[...] = acc.astype(o_ref.dtype)


def conv1_lrelu_pallas(x_nhwc, w_oihw, b, *, leaky_slope=0.2):
    """Conv2d(Cin->Cout, 4x4, stride 2, pad 1) + LeakyReLU. NHWC in, NHWC bf16 out."""
    N, H, W, Cin = x_nhwc.shape
    Cout, Cin_w, KH, KW = w_oihw.shape
    assert Cin == Cin_w and (KH, KW) == (4, 4)
    assert H % 2 == 0 and W % 2 == 0
    OH, OW = H // 2, W // 2

    # Cast to bf16 first: halves the im2col concat traffic; the matmul
    # operands would be cast to bf16 anyway, so the result is unchanged.
    xp = jnp.pad(x_nhwc.astype(jnp.bfloat16), ((0, 0), (1, 1), (1, 1), (0, 0)))
    # im2col; K ordered (kh, kw, cin) to match the transposed OIHW weights.
    cols = []
    for kh in range(KH):
        for kw in range(KW):
            cols.append(xp[:, kh:kh + 2 * OH:2, kw:kw + 2 * OW:2, :])
    patches = jnp.concatenate(cols, axis=-1)              # (N, OH, OW, 96) bf16

    K = KH * KW * Cin                                     # 96
    Kp = _round_up(K, 128)                                # 128: dense lanes / full MXU K pass
    M = N * OH * OW
    # Large M tiles (mem-bound kernel): fewer grid steps, ~0.35us/step amortized.
    tm = min(2048, _round_up(M, 16))                      # 16 for bf16 sublane tiling
    Mp = _round_up(M, tm)

    # Single pad: rows padded to the tile grid, K padded to 128 lanes.
    pm = jnp.pad(patches.reshape(M, K), ((0, Mp - M), (0, Kp - K)))
    wm = jnp.pad(jnp.transpose(w_oihw, (2, 3, 1, 0)).reshape(K, Cout),
                 ((0, Kp - K), (0, 0))).astype(jnp.bfloat16)
    bm = b.reshape(1, Cout).astype(jnp.float32)

    kernel = functools.partial(_conv1_mm_kernel, leaky_slope=leaky_slope)
    out = pl.pallas_call(
        kernel,
        out_shape=jax.ShapeDtypeStruct((Mp, Cout), jnp.bfloat16),
        grid_spec=pltpu.PrefetchScalarGridSpec(
            num_scalar_prefetch=0,
            grid=(Mp // tm,),
            in_specs=[
                pl.BlockSpec((tm, Kp), lambda i: (i, 0)),     # streamed patch rows
                pl.BlockSpec((Kp, Cout), lambda i: (0, 0)),   # resident weights
                pl.BlockSpec((1, Cout), lambda i: (0, 0)),    # resident bias
            ],
            out_specs=pl.BlockSpec((tm, Cout), lambda i: (i, 0)),
        ),
        compiler_params=pltpu.CompilerParams(
            dimension_semantics=("parallel",),       # M tiles shard across TensorCores
            vmem_limit_bytes=48 * 1024 * 1024,       # explicit; fits v7x's 64 MiB VMEM
        ),
    )(pm, wm, bm)

    return out[:M].reshape(N, OH, OW, Cout)


# ---------------------------------------------------------------------------
# Layer 2: Cout == 1 conv as a per-image VPU multiply-reduce kernel.
# ---------------------------------------------------------------------------
def _conv2_vpu_kernel(h_ref, w2_ref, b2_ref, o_ref, *, oh, ow, cin):
    # h_ref : (1, 2, 2, oh+1, ow+1, cin)  where [0, ph, pw, bh, bw, c] =
    #         h_padded[2*bh + ph, 2*bw + pw, c]   (spatial zero pad of 1)
    # w2_ref: (4, 4, 1, cin)  -- w2[0, c, kh, kw] stored at [kh, kw, 0, c]
    # b2_ref: (1, 1)          o_ref: (1, oh, ow)
    # Cast each parity plane to f32 exactly once, then gather the 16 taps as
    # static contiguous slices (no strided access, no in-kernel reshape).
    planes = [[h_ref[0, ph, pw].astype(jnp.float32) for pw in range(2)]
              for ph in range(2)]                         # each (oh+1, ow+1, cin)
    acc = jnp.zeros((oh, ow, cin), jnp.float32)
    for kh in range(4):
        for kw in range(4):
            # tap position 2*o + k  ->  parity k%2, block offset k//2
            tap = planes[kh % 2][kw % 2][kh // 2:kh // 2 + oh,
                                         kw // 2:kw // 2 + ow, :]
            wv = w2_ref[kh, kw].reshape(1, 1, cin)
            acc = acc + tap * wv                          # VPU fma over (oh, ow, cin)
    out = jnp.sum(acc, axis=-1) + b2_ref[...]             # (oh, ow), one lane-reduce
    o_ref[...] = out[None, :, :].astype(o_ref.dtype)


def conv2_pallas(h_nhwc, w_oihw, b):
    """Conv2d(Cin->1, 4x4, stride 2, pad 1). NHWC in, (N, OH, OW) f32 out."""
    N, OH1, OW1, Cin = h_nhwc.shape
    Cout, Cin_w, KH, KW = w_oihw.shape
    assert Cin == Cin_w and Cout == 1 and (KH, KW) == (4, 4)
    assert OH1 % 2 == 0 and OW1 % 2 == 0
    OH2, OW2 = OH1 // 2, OW1 // 2

    # Spatial pad (padding=1), then split each spatial dim into (block, parity)
    # and move the parities up front:
    #   (N, 2*(OH2+1), 2*(OW2+1), C) -> (N, ph, pw, OH2+1, OW2+1, C)
    # so every conv2 tap is a contiguous static slice inside the kernel.
    hp = jnp.pad(h_nhwc, ((0, 0), (1, 1), (1, 1), (0, 0)))
    hp = hp.reshape(N, OH2 + 1, 2, OW2 + 1, 2, Cin)
    hp = jnp.transpose(hp, (0, 2, 4, 1, 3, 5))

    # (1, Cin, 4, 4) -> (4, 4, 1, Cin); conv2 math stays in f32 on the VPU.
    w2m = jnp.transpose(w_oihw[0], (1, 2, 0))[:, :, None, :].astype(jnp.float32)
    b2m = b.reshape(1, 1).astype(jnp.float32)

    kernel = functools.partial(_conv2_vpu_kernel, oh=OH2, ow=OW2, cin=Cin)
    # One grid step per image; the per-image block easily fits VMEM for
    # typical pix2pix sizes (256x256 input -> ~2 MiB bf16 block).
    out = pl.pallas_call(
        kernel,
        out_shape=jax.ShapeDtypeStruct((N, OH2, OW2), jnp.float32),
        grid_spec=pltpu.PrefetchScalarGridSpec(
            num_scalar_prefetch=0,
            grid=(N,),
            in_specs=[
                pl.BlockSpec((1, 2, 2, OH2 + 1, OW2 + 1, Cin),
                             lambda n: (n, 0, 0, 0, 0, 0)),
                pl.BlockSpec((KH, KW, 1, Cin), lambda n: (0, 0, 0, 0)),
                pl.BlockSpec((1, 1), lambda n: (0, 0)),
            ],
            out_specs=pl.BlockSpec((1, OH2, OW2), lambda n: (n, 0, 0)),
        ),
        compiler_params=pltpu.CompilerParams(
            dimension_semantics=("parallel",),       # images shard across TensorCores
            vmem_limit_bytes=48 * 1024 * 1024,
        ),
    )(hp, w2m, b2m)
    return out


# ---------------------------------------------------------------------------
# Forward pass matching PatchDiscriminator.forward
# ---------------------------------------------------------------------------
def patch_discriminator_forward(x_nchw, y_nchw, params):
    """cat(x, y, dim=1) -> Conv(6,64,4,2,1) -> LeakyReLU(0.2) -> Conv(64,1,4,2,1)."""
    w1, b1, w2, b2 = params
    N, C, H, W = x_nchw.shape
    assert H % 4 == 0 and W % 4 == 0
    inp = jnp.concatenate([x_nchw, y_nchw], axis=1)           # (N, 6, H, W)
    h = jnp.transpose(inp, (0, 2, 3, 1))                      # NCHW -> NHWC
    h = conv1_lrelu_pallas(h, w1, b1, leaky_slope=0.2)        # (N, H/2, W/2, 64) bf16
    o = conv2_pallas(h, w2, b2)                               # (N, H/4, W/4) f32
    return o[:, None, :, :]                                   # -> (N, 1, H/4, W/4) NCHW


def _reference_forward(x, y, w1, b1, w2, b2):
    inp = jnp.concatenate([x, y], axis=1)
    h = jax.lax.conv_general_dilated(
        inp, w1, (2, 2), [(1, 1), (1, 1)],
        dimension_numbers=("NCHW", "OIHW", "NCHW"))
    h = h + b1[None, :, None, None]
    h = jnp.where(h >= 0, h, 0.2 * h)
    o = jax.lax.conv_general_dilated(
        h, w2, (2, 2), [(1, 1), (1, 1)],
        dimension_numbers=("NCHW", "OIHW", "NCHW"))
    return o + b2[None, :, None, None]


if __name__ == "__main__":
    key = jax.random.PRNGKey(0)
    kx, ky, kw1, kb1, kw2, kb2 = jax.random.split(key, 6)

    # Small inputs: RGB image pairs, batch=2, 16x16 spatial.
    N, C, H, W = 2, 3, 16, 16
    x = jax.random.normal(kx, (N, C, H, W), jnp.float32)
    y = jax.random.normal(ky, (N, C, H, W), jnp.float32)

    # Deterministic synthetic parameters (shapes per nn.Conv2d in __init__).
    w1 = jax.random.normal(kw1, (64, 6, 4, 4), jnp.float32) * 0.05
    b1 = jax.random.normal(kb1, (64,), jnp.float32) * 0.05
    w2 = jax.random.normal(kw2, (1, 64, 4, 4), jnp.float32) * 0.05
    b2 = jax.random.normal(kb2, (1,), jnp.float32) * 0.05
    params = (w1, b1, w2, b2)

    out = jax.block_until_ready(patch_discriminator_forward(x, y, params))
    assert out.shape == (N, 1, H // 4, W // 4), out.shape

    ref = jax.block_until_ready(_reference_forward(x, y, w1, b1, w2, b2))
    # bf16 matmul operands / bf16 intermediate vs the f32 XLA reference.
    max_err = float(jnp.max(jnp.abs(out - ref)))
    assert jnp.allclose(out, ref, atol=3e-2, rtol=3e-2), f"mismatch, max_err={max_err}"

    print("KERNEL_OK")
</pallas_src>

<mosaic_0001>
module attributes {stable_mosaic.version = 11 : i64} {
  func.func @_conv1_mm_kernel(%arg0: i32, %arg1: memref<128x128xbf16, #tpu.memory_space<vmem>>, %arg2: memref<128x64xbf16, #tpu.memory_space<vmem>>, %arg3: memref<1x64xf32, #tpu.memory_space<vmem>>, %arg4: memref<128x64xbf16, #tpu.memory_space<vmem>>) attributes {dimension_semantics = [#tpu.dimension_semantics<parallel>], iteration_bounds = array<i64: 1>, scalar_prefetch = 0 : i64, scratch_operands = 0 : i64, tpu.core_type = #tpu.core_type<tc>, window_params = [{transform_indices = @transform_0, window_bounds = array<i64: 128, 128>}, {pipeline_mode = #tpu.pipeline_mode<synchronous>, transform_indices = @transform_1, window_bounds = array<i64: 128, 64>}, {pipeline_mode = #tpu.pipeline_mode<synchronous>, transform_indices = @transform_2, window_bounds = array<i64: 1, 64>}, {transform_indices = @transform_3, window_bounds = array<i64: 128, 64>}]} {
    %c0 = arith.constant 0 : index
    %c0_0 = arith.constant 0 : index
    %0 = vector.load %arg1[%c0, %c0_0] : memref<128x128xbf16, #tpu.memory_space<vmem>>, vector<128x128xbf16>
    %c0_1 = arith.constant 0 : index
    %c0_2 = arith.constant 0 : index
    %1 = vector.load %arg2[%c0_1, %c0_2] : memref<128x64xbf16, #tpu.memory_space<vmem>>, vector<128x64xbf16>
    %cst = arith.constant dense<0.000000e+00> : vector<128x64xf32>
    %2 = tpu.matmul %0, %1, %cst {dimension_numbers = #tpu.dot_dimension_numbers<[1], [0], [0], [1], [0, 0, 1, 1], [], []>} : vector<128x128xbf16>, vector<128x64xbf16>, vector<128x64xf32> -> vector<128x64xf32>
    %c0_3 = arith.constant 0 : index
    %c0_4 = arith.constant 0 : index
    %3 = vector.load %arg3[%c0_3, %c0_4] : memref<1x64xf32, #tpu.memory_space<vmem>>, vector<1x64xf32>
    %4 = vector.broadcast %3 : vector<1x64xf32> to vector<128x64xf32>
    %5 = arith.addf %2, %4 : vector<128x64xf32>
    %cst_5 = arith.constant 0.000000e+00 : f32
    %6 = vector.broadcast %cst_5 : f32 to vector<128x64xf32>
    %7 = arith.cmpf oge, %5, %6 : vector<128x64xf32>
    %cst_6 = arith.constant 2.000000e-01 : f32
    %8 = vector.broadcast %cst_6 : f32 to vector<128x64xf32>
    %9 = arith.mulf %8, %5 : vector<128x64xf32>
    %10 = arith.select %7, %5, %9 : vector<128x64xi1>, vector<128x64xf32>
    %11 = arith.truncf %10 : vector<128x64xf32> to vector<128x64xbf16>
    %c0_7 = arith.constant 0 : index
    %c0_8 = arith.constant 0 : index
    %12 = vector.load %arg4[%c0_7, %c0_8] : memref<128x64xbf16, #tpu.memory_space<vmem>>, vector<128x64xbf16>
    tpu.vector_store %arg4[%c0_7, %c0_8], %11 {strides = array<i32>} : memref<128x64xbf16, #tpu.memory_space<vmem>>, vector<128x64xbf16>,
    return
  }
  func.func @transform_0(%arg0: i32) -> (i32, i32) {
    %c0_i32 = arith.constant 0 : i32
    %c0_i32_0 = arith.constant 0 : i32
    return %arg0, %c0_i32 : i32, i32
  }
  func.func @transform_1(%arg0: i32) -> (i32, i32) {
    %c0_i32 = arith.constant 0 : i32
    %c0_i32_0 = arith.constant 0 : i32
    %c0_i32_1 = arith.constant 0 : i32
    return %c0_i32, %c0_i32_0 : i32, i32
  }
  func.func @transform_2(%arg0: i32) -> (i32, i32) {
    %c0_i32 = arith.constant 0 : i32
    %c0_i32_0 = arith.constant 0 : i32
    %c0_i32_1 = arith.constant 0 : i32
    return %c0_i32, %c0_i32_0 : i32, i32
  }
  func.func @transform_3(%arg0: i32) -> (i32, i32) {
    %c0_i32 = arith.constant 0 : i32
    %c0_i32_0 = arith.constant 0 : i32
    return %arg0, %c0_i32 : i32, i32
  }
}

</mosaic_0001>

<llo_original>
// kernel: tpu_custom_call.1
$region0: #{tpu_custom_call.1}
  #allocation0 [shape = 'u32[]', space=smem, size = 0x4, offset = 0x4, fixed_abs, tag = 'smem constant byte address 0x4 - core index']
  #allocation1 [shape = 'u32[144,128]{1,0:T(1,128)}', space=vmem, size = 0x12000, scoped, tag = 'internal scratch']
  %s0 = inlined_call_operand.vmem [shape: bf16[128,128], index: 0, kind: input, shape index: {}]
  %s1 = inlined_call_operand.vmem [shape: bf16[128,64], index: 1, kind: input, shape index: {}]
  %s2 = inlined_call_operand.vmem [shape: f32[1,64], index: 2, kind: input, shape index: {}]
  %s3 = inlined_call_operand.vmem [shape: bf16[128,64], index: 3, kind: output, shape index: {}]
  %s4 = sld [smem:[#allocation0]]
  $region22: #{tpu_custom_call.1} parent=0
    _
  %s6 = ssub.s32 1, %s4
  %s7 = scalar_select 0, %s6, %s4
  // Predicated region
  $region2: #{tpu_custom_call.1} parent=0 // pred_check
    _
  $region3: #{tpu_custom_call.1} parent=0 // pred_check_branch
    %9 = sbr.rel (0) target = $region5
  $region4: #{tpu_custom_call.1} parent=0 // pred_region
    _
  $region5: #{tpu_custom_call.1} parent=0 // pred_fallthru
    _
  // Predicated region
  $region6: #{tpu_custom_call.1} parent=0 // pred_check
    _
  $region7: #{tpu_custom_call.1} parent=0 // pred_check_branch
    %11 = sbr.rel (0) target = $region9
  $region8: #{tpu_custom_call.1} parent=0 // pred_region
    _
  $region9: #{tpu_custom_call.1} parent=0 // pred_fallthru
    _
  // Predicated region
  $region10: #{tpu_custom_call.1} parent=0 // pred_check
    _
  $region11: #{tpu_custom_call.1} parent=0 // pred_check_branch
    %13 = sbr.rel (0) target = $region13
  $region12: #{tpu_custom_call.1} parent=0 // pred_region
    _
  $region13: #{tpu_custom_call.1} parent=0 // pred_fallthru
    _
  %v15 = vld [vmem:[%s0] sm:$0xf]
  %v16 = vld [vmem:[%s0 + $0x4] sm:$0xf]
  %v17 = vld [vmem:[%s0 + $0x8] sm:$0xf]
  %v18 = vld [vmem:[%s0 + $0xc] sm:$0xf]
  %v19 = vld [vmem:[%s0 + $0x10] sm:$0xf]
  %v20 = vld [vmem:[%s0 + $0x14] sm:$0xf]
  %v21 = vld [vmem:[%s0 + $0x18] sm:$0xf]
  %v22 = vld [vmem:[%s0 + $0x1c] sm:$0xf]
  %v23 = vld [vmem:[%s0 + $0x20] sm:$0xf]
  %v24 = vld [vmem:[%s0 + $0x24] sm:$0xf]
  %v25 = vld [vmem:[%s0 + $0x28] sm:$0xf]
  %v26 = vld [vmem:[%s0 + $0x2c] sm:$0xf]
  %v27 = vld [vmem:[%s0 + $0x30] sm:$0xf]
  %v28 = vld [vmem:[%s0 + $0x34] sm:$0xf]
  %v29 = vld [vmem:[%s0 + $0x38] sm:$0xf]
  %v30 = vld [vmem:[%s0 + $0x3c] sm:$0xf]
  %v31 = vld [vmem:[%s1] sm:$0xf]
  %v32 = vld [vmem:[%s1 + $0x4] sm:$0xf]
  %v33 = vld [vmem:[%s1 + $0x8] sm:$0xf]
  %v34 = vld [vmem:[%s1 + $0xc] sm:$0xf]
  %v35 = vld [vmem:[%s1 + $0x10] sm:$0xf]
  %v36 = vld [vmem:[%s1 + $0x14] sm:$0xf]
  %v37 = vld [vmem:[%s1 + $0x18] sm:$0xf]
  %v38 = vld [vmem:[%s1 + $0x1c] sm:$0xf]
  %v39 = vld [vmem:[%s1 + $0x20] sm:$0xf]
  %v40 = vld [vmem:[%s1 + $0x24] sm:$0xf]
  %v41 = vld [vmem:[%s1 + $0x28] sm:$0xf]
  %v42 = vld [vmem:[%s1 + $0x2c] sm:$0xf]
  %v43 = vld [vmem:[%s1 + $0x30] sm:$0xf]
  %v44 = vld [vmem:[%s1 + $0x34] sm:$0xf]
  %v45 = vld [vmem:[%s1 + $0x38] sm:$0xf]
  %v46 = vld [vmem:[%s1 + $0x3c] sm:$0xf]
  %v47 = vld [vmem:[%s2] sm:$0x1]
  %v49 = vlaneseq
  %v50 = vshrl.u32 %v49, 7
  %v51 = vsub.s32 0, %v50
  %v52 = vrot.slane %v47, %v51
  %v70 = vunpack.c.l.b16 %v15
  %v71 = vunpack.c.l.b16 %v16
  %v72 = vunpack.c.l.b16 %v17
  %v73 = vunpack.c.l.b16 %v18
  %v74 = vunpack.c.l.b16 %v19
  %v75 = vunpack.c.l.b16 %v20
  %v76 = vunpack.c.l.b16 %v21
  %v77 = vunpack.c.l.b16 %v22
  %v78 = vunpack.c.l.b16 %v23
  %v79 = vunpack.c.l.b16 %v24
  %v80 = vunpack.c.l.b16 %v25
  %v81 = vunpack.c.l.b16 %v26
  %v82 = vunpack.c.l.b16 %v27
  %v83 = vunpack.c.l.b16 %v28
  %v84 = vunpack.c.l.b16 %v29
  %v85 = vunpack.c.l.b16 %v30
  %v86 = vpack.c.b16 %v71, %v70
  %v87 = vpack.c.b16 %v73, %v72
  %v88 = vpack.c.b16 %v75, %v74
  %v89 = vpack.c.b16 %v77, %v76
  %v90 = vpack.c.b16 %v79, %v78
  %v91 = vpack.c.b16 %v81, %v80
  %v92 = vpack.c.b16 %v83, %v82
  %v93 = vpack.c.b16 %v85, %v84
  %v118 = vunpack.c.l.b16 %v31
  %v119 = vunpack.c.l.b16 %v32
  %v120 = vunpack.c.l.b16 %v33
  %v121 = vunpack.c.l.b16 %v34
  %v122 = vunpack.c.l.b16 %v35
  %v123 = vunpack.c.l.b16 %v36
  %v124 = vunpack.c.l.b16 %v37
  %v125 = vunpack.c.l.b16 %v38
  %v126 = vunpack.c.l.b16 %v39
  %v127 = vunpack.c.l.b16 %v40
  %v128 = vunpack.c.l.b16 %v41
  %v129 = vunpack.c.l.b16 %v42
  %v130 = vunpack.c.l.b16 %v43
  %v131 = vunpack.c.l.b16 %v44
  %v132 = vunpack.c.l.b16 %v45
  %v133 = vunpack.c.l.b16 %v46
  %v134 = vpack.c.b16 %v119, %v118
  %v135 = vpack.c.b16 %v121, %v120
  %v136 = vpack.c.b16 %v123, %v122
  %v137 = vpack.c.b16 %v125, %v124
  %v138 = vpack.c.b16 %v127, %v126
  %v139 = vpack.c.b16 %v129, %v128
  %v140 = vpack.c.b16 %v131, %v130
  %v141 = vpack.c.b16 %v133, %v132
  %150 = vmatprep.subr.bf16.mxu0 0
  %151 = vmatpush1.bf16.msra.mxu0 %v134
  %152 = vmatprep.subr.bf16.mxu0 0
  %153 = vmatpush1.bf16.msra.mxu0 %v135
  %154 = vmatprep.subr.bf16.mxu0 0
  %155 = vmatpush1.bf16.msra.mxu0 %v136
  %156 = vmatprep.subr.bf16.mxu0 0
  %157 = vmatpush1.bf16.msra.mxu0 %v137
  %158 = vmatprep.subr.bf16.mxu0 0
  %159 = vmatpush1.bf16.msra.mxu0 %v138
  %160 = vmatprep.subr.bf16.mxu0 0
  %161 = vmatpush1.bf16.msra.mxu0 %v139
  %162 = vmatprep.subr.bf16.mxu0 0
  %163 = vmatpush1.bf16.msra.mxu0 %v140
  %164 = vmatprep.subr.bf16.mxu0 0
  %165 = vmatpush1.bf16.msra.mxu0 %v141
  %166 = vmatprep.subr.bf16.mxu0 0
  %167 = vmatpush1.bf16.msra.mxu0 0
  %168 = vmatprep.subr.bf16.mxu0 0
  %169 = vmatpush1.bf16.msra.mxu0 0
  %170 = vmatprep.subr.bf16.mxu0 0
  %171 = vmatpush1.bf16.msra.mxu0 0
  %172 = vmatprep.subr.bf16.mxu0 0
  %173 = vmatpush1.bf16.msra.mxu0 0
  %174 = vmatprep.subr.bf16.mxu0 0
  %175 = vmatpush1.bf16.msra.mxu0 0
  %176 = vmatprep.subr.bf16.mxu0 0
  %177 = vmatpush1.bf16.msra.mxu0 0
  %178 = vmatprep.subr.bf16.mxu0 0
  %179 = vmatpush1.bf16.msra.mxu0 0
  %180 = vmatprep.subr.bf16.mxu0 0
  %181 = vmatpush1.bf16.msra.mxu0 0
  %182 = vmatprep.mubr.bf16.mxu0 0
  %183 = vmatmul.mubr.bf16.gmra.mrb[0].mxu0 %v86
  %v184 = vpop.f32.mrb[0].mxu0
  %v185 = vadd.f32 %v52, %v184
  %v186 = vpop.f32.mrb[0].mxu0
  %v187 = vpop.f32.mrb[0].mxu0
  %v188 = vadd.f32 %v52, %v187
  %v189 = vpop.f32.mrb[0].mxu0
  %190 = vmatprep.mubr.bf16.mxu0 0
  %191 = vmatmul.mubr.bf16.gmra.mrb[0].mxu0 %v87
  %v192 = vpop.f32.mrb[0].mxu0
  %v193 = vadd.f32 %v52, %v192
  %v194 = vpop.f32.mrb[0].mxu0
  %v195 = vpop.f32.mrb[0].mxu0
  %v196 = vadd.f32 %v52, %v195
  %v197 = vpop.f32.mrb[0].mxu0
  %198 = vmatprep.mubr.bf16.mxu0 0
  %199 = vmatmul.mubr.bf16.gmra.mrb[0].mxu0 %v88
  %v200 = vpop.f32.mrb[0].mxu0
  %v201 = vadd.f32 %v52, %v200
  %v202 = vpop.f32.mrb[0].mxu0
  %v203 = vpop.f32.mrb[0].mxu0
  %v204 = vadd.f32 %v52, %v203
  %v205 = vpop.f32.mrb[0].mxu0
  %206 = vmatprep.mubr.bf16.mxu0 0
  %207 = vmatmul.mubr.bf16.gmra.mrb[0].mxu0 %v89
  %v208 = vpop.f32.mrb[0].mxu0
  %v209 = vadd.f32 %v52, %v208
  %v210 = vpop.f32.mrb[0].mxu0
  %v211 = vpop.f32.mrb[0].mxu0
  %v212 = vadd.f32 %v52, %v211
  %v213 = vpop.f32.mrb[0].mxu0
  %214 = vmatprep.mubr.bf16.mxu0 0
  %215 = vmatmul.mubr.bf16.gmra.mrb[0].mxu0 %v90
  %v216 = vpop.f32.mrb[0].mxu0
  %v217 = vadd.f32 %v52, %v216
  %v218 = vpop.f32.mrb[0].mxu0
  %v219 = vpop.f32.mrb[0].mxu0
  %v220 = vadd.f32 %v52, %v219
  %v221 = vpop.f32.mrb[0].mxu0
  %222 = vmatprep.mubr.bf16.mxu0 0
  %223 = vmatmul.mubr.bf16.gmra.mrb[0].mxu0 %v91
  %v224 = vpop.f32.mrb[0].mxu0
  %v225 = vadd.f32 %v52, %v224
  %v226 = vpop.f32.mrb[0].mxu0
  %v227 = vpop.f32.mrb[0].mxu0
  %v228 = vadd.f32 %v52, %v227
  %v229 = vpop.f32.mrb[0].mxu0
  %230 = vmatprep.mubr.bf16.mxu0 0
  %231 = vmatmul.mubr.bf16.gmra.mrb[0].mxu0 %v92
  %v232 = vpop.f32.mrb[0].mxu0
  %v233 = vadd.f32 %v52, %v232
  %v234 = vpop.f32.mrb[0].mxu0
  %v235 = vpop.f32.mrb[0].mxu0
  %v236 = vadd.f32 %v52, %v235
  %v237 = vpop.f32.mrb[0].mxu0
  %238 = vmatprep.mubr.bf16.mxu0 0
  %239 = vmatmul.mubr.bf16.gmra.mrb[0].mxu0 %v93
  %v240 = vpop.f32.mrb[0].mxu0
  %v241 = vadd.f32 %v52, %v240
  %v242 = vpop.f32.mrb[0].mxu0
  %v243 = vpop.f32.mrb[0].mxu0
  %v244 = vadd.f32 %v52, %v243
  %v245 = vpop.f32.mrb[0].mxu0
  %246 = vdwg.mxu0
  %vm247 = vcmp.ge.f32.partialorder %v185, 0.0
  %vm248 = vcmp.ge.f32.partialorder %v188, 0.0
  %vm249 = vcmp.ge.f32.partialorder %v193, 0.0
  %vm250 = vcmp.ge.f32.partialorder %v196, 0.0
  %vm251 = vcmp.ge.f32.partialorder %v201, 0.0
  %vm252 = vcmp.ge.f32.partialorder %v204, 0.0
  %vm253 = vcmp.ge.f32.partialorder %v209, 0.0
  %vm254 = vcmp.ge.f32.partialorder %v212, 0.0
  %vm255 = vcmp.ge.f32.partialorder %v217, 0.0
  %vm256 = vcmp.ge.f32.partialorder %v220, 0.0
  %vm257 = vcmp.ge.f32.partialorder %v225, 0.0
  %vm258 = vcmp.ge.f32.partialorder %v228, 0.0
  %vm259 = vcmp.ge.f32.partialorder %v233, 0.0
  %vm260 = vcmp.ge.f32.partialorder %v236, 0.0
  %vm261 = vcmp.ge.f32.partialorder %v241, 0.0
  %vm262 = vcmp.ge.f32.partialorder %v244, 0.0
  %v263 = vmul.f32 %v185, 0.2
  %v264 = vmul.f32 %v188, 0.2
  %v265 = vmul.f32 %v193, 0.2
  %v266 = vmul.f32 %v196, 0.2
  %v267 = vmul.f32 %v201, 0.2
  %v268 = vmul.f32 %v204, 0.2
  %v269 = vmul.f32 %v209, 0.2
  %v270 = vmul.f32 %v212, 0.2
  %v271 = vmul.f32 %v217, 0.2
  %v272 = vmul.f32 %v220, 0.2
  %v273 = vmul.f32 %v225, 0.2
  %v274 = vmul.f32 %v228, 0.2
  %v275 = vmul.f32 %v233, 0.2
  %v276 = vmul.f32 %v236, 0.2
  %v277 = vmul.f32 %v241, 0.2
  %v278 = vmul.f32 %v244, 0.2
  %v279 = vsel %vm247, %v185, %v263
  %v280 = vsel %vm248, %v188, %v264
  %v281 = vsel %vm249, %v193, %v265
  %v282 = vsel %vm250, %v196, %v266
  %v283 = vsel %vm251, %v201, %v267
  %v284 = vsel %vm252, %v204, %v268
  %v285 = vsel %vm253, %v209, %v269
  %v286 = vsel %vm254, %v212, %v270
  %v287 = vsel %vm255, %v217, %v271
  %v288 = vsel %vm256, %v220, %v272
  %v289 = vsel %vm257, %v225, %v273
  %v290 = vsel %vm258, %v228, %v274
  %v291 = vsel %vm259, %v233, %v275
  %v292 = vsel %vm260, %v236, %v276
  %v293 = vsel %vm261, %v241, %v277
  %v294 = vsel %vm262, %v244, %v278
  %v295 = vpack.c.bf16 %v280, %v279
  %v296 = vpack.c.bf16 %v282, %v281
  %v297 = vpack.c.bf16 %v284, %v283
  %v298 = vpack.c.bf16 %v286, %v285
  %v299 = vpack.c.bf16 %v288, %v287
  %v300 = vpack.c.bf16 %v290, %v289
  %v301 = vpack.c.bf16 %v292, %v291
  %v302 = vpack.c.bf16 %v294, %v293
  %v311 = vunpack.c.l.b16 %v295
  %v312 = vunpack.c.h.b16 %v295
  %v313 = vunpack.c.l.b16 %v296
  %v314 = vunpack.c.h.b16 %v296
  %v315 = vunpack.c.l.b16 %v297
  %v316 = vunpack.c.h.b16 %v297
  %v317 = vunpack.c.l.b16 %v298
  %v318 = vunpack.c.h.b16 %v298
  %v319 = vunpack.c.l.b16 %v299
  %v320 = vunpack.c.h.b16 %v299
  %v321 = vunpack.c.l.b16 %v300
  %v322 = vunpack.c.h.b16 %v300
  %v323 = vunpack.c.l.b16 %v301
  %v324 = vunpack.c.h.b16 %v301
  %v325 = vunpack.c.l.b16 %v302
  %v326 = vunpack.c.h.b16 %v302
  %v327 = vpack.c.b16 %v311, %v311
  %v328 = vpack.c.b16 %v312, %v312
  %v329 = vpack.c.b16 %v313, %v313
  %v330 = vpack.c.b16 %v314, %v314
  %v331 = vpack.c.b16 %v315, %v315
  %v332 = vpack.c.b16 %v316, %v316
  %v333 = vpack.c.b16 %v317, %v317
  %v334 = vpack.c.b16 %v318, %v318
  %v335 = vpack.c.b16 %v319, %v319
  %v336 = vpack.c.b16 %v320, %v320
  %v337 = vpack.c.b16 %v321, %v321
  %v338 = vpack.c.b16 %v322, %v322
  %v339 = vpack.c.b16 %v323, %v323
  %v340 = vpack.c.b16 %v324, %v324
  %v341 = vpack.c.b16 %v325, %v325
  %v342 = vpack.c.b16 %v326, %v326
  %vm359 = vcmask 519168
  %360 = vst.msk [vmem:[%s3] sm:$0xf] %vm359, %v327
  %361 = vst.msk [vmem:[%s3 + $0x4] sm:$0xf] %vm359, %v328
  %362 = vst.msk [vmem:[%s3 + $0x8] sm:$0xf] %vm359, %v329
  %363 = vst.msk [vmem:[%s3 + $0xc] sm:$0xf] %vm359, %v330
  %364 = vst.msk [vmem:[%s3 + $0x10] sm:$0xf] %vm359, %v331
  %365 = vst.msk [vmem:[%s3 + $0x14] sm:$0xf] %vm359, %v332
  %366 = vst.msk [vmem:[%s3 + $0x18] sm:$0xf] %vm359, %v333
  %367 = vst.msk [vmem:[%s3 + $0x1c] sm:$0xf] %vm359, %v334
  %368 = vst.msk [vmem:[%s3 + $0x20] sm:$0xf] %vm359, %v335
  %369 = vst.msk [vmem:[%s3 + $0x24] sm:$0xf] %vm359, %v336
  %370 = vst.msk [vmem:[%s3 + $0x28] sm:$0xf] %vm359, %v337
  %371 = vst.msk [vmem:[%s3 + $0x2c] sm:$0xf] %vm359, %v338
  %372 = vst.msk [vmem:[%s3 + $0x30] sm:$0xf] %vm359, %v339
  %373 = vst.msk [vmem:[%s3 + $0x34] sm:$0xf] %vm359, %v340
  %374 = vst.msk [vmem:[%s3 + $0x38] sm:$0xf] %vm359, %v341
  %375 = vst.msk [vmem:[%s3 + $0x3c] sm:$0xf] %vm359, %v342
  // Predicated region
  $region14: #{tpu_custom_call.1} parent=0 // pred_check
    _
  $region15: #{tpu_custom_call.1} parent=0 // pred_check_branch
    %377 = sbr.rel (0) target = $region17
  $region16: #{tpu_custom_call.1} parent=0 // pred_region
    _
  $region17: #{tpu_custom_call.1} parent=0 // pred_fallthru
    _
  // Predicated region
  $region18: #{tpu_custom_call.1} parent=0 // pred_check
    _
  $region19: #{tpu_custom_call.1} parent=0 // pred_check_branch
    %379 = sbr.rel (0) target = $region21
  $region20: #{tpu_custom_call.1} parent=0 // pred_region
    _
  $region21: #{tpu_custom_call.1} parent=0 // pred_fallthru
    _

</llo_original>
